<compile_context>
chip_gen: v5e
topology: v5e:2x2
jax: 0.10.0
libtpu: 0.0.40
codegen_flags: <defaults>
</compile_context>

<pallas_src>
import jax
import jax.numpy as jnp
from jax import lax
from jax.experimental import pallas as pl
from jax.experimental.pallas import tpu as pltpu

_EPS = 1e-5  # nn.InstanceNorm2d default eps


def _make_masknorm_kernel(hw):
    """Kernel over one (tb, tc, hw) x/out block; mask block is (tb, 1|tc, hw)."""
    inv_hw = 1.0 / float(hw)

    def kernel(x_ref, m_ref, o_ref):
        x = x_ref[...].astype(jnp.float32)
        m = m_ref[...].astype(jnp.float32)

        # ---- single-pass row sums (lane-axis reductions) -----------------
        xm = x * m
        sum_m = jnp.sum(m, axis=-1, keepdims=True)        # (tb, 1|tc, 1)
        sum_x = jnp.sum(x, axis=-1, keepdims=True)        # (tb, tc, 1)
        sum_xm = jnp.sum(xm, axis=-1, keepdims=True)
        sum_x2 = jnp.sum(x * x, axis=-1, keepdims=True)
        sum_x2m = jnp.sum(xm * x, axis=-1, keepdims=True)

        # Pixel counts (binary mask). The exact ==0 guard matches the
        # PyTorch `num_pixels[num_pixels == 0] = 1` fixup.
        npix_fg = sum_m
        npix_bg = float(hw) - npix_fg
        nz_fg = jnp.where(npix_fg == 0.0, 1.0, npix_fg)
        nz_bg = jnp.where(npix_bg == 0.0, 1.0, npix_bg)

        sum_x_bg = sum_x - sum_xm
        sum_x2_bg = sum_x2 - sum_x2m
        mu_fg = sum_xm / nz_fg
        mu_bg = sum_x_bg / nz_bg

        # InstanceNorm variance of (region + (1-mask)*mu) over ALL hw pixels;
        # for a binary mask this equals sum(mask*(x-mu)^2)/hw, expanded from
        # the single-pass sums (clamped for f32 cancellation).
        var_fg = (sum_x2m - 2.0 * mu_fg * sum_xm + npix_fg * mu_fg * mu_fg) * inv_hw
        var_bg = (sum_x2_bg - 2.0 * mu_bg * sum_x_bg + npix_bg * mu_bg * mu_bg) * inv_hw
        var_fg = jnp.maximum(var_fg, 0.0)
        var_bg = jnp.maximum(var_bg, 0.0)

        s_fg = lax.rsqrt(var_fg + _EPS) * jnp.sqrt(nz_fg * inv_hw)
        s_bg = lax.rsqrt(var_bg + _EPS) * jnp.sqrt(nz_bg * inv_hw)

        # ---- one fused elementwise output pass ---------------------------
        out = m * ((x - mu_fg) * s_fg) + (1.0 - m) * ((x - mu_bg) * s_bg)
        o_ref[...] = out.astype(o_ref.dtype)

    return kernel


def _vmem_limit_bytes():
    """Scoped-VMEM request derived from the chip's physical VMEM."""
    try:
        cap = int(pltpu.get_tpu_info().vmem_capacity_bytes)
    except Exception:
        cap = 64 * 1024 * 1024          # conservative (v7x-sized) fallback
    # Never request more than ~70% of physical (v7x: ~45 MiB of 64 MiB);
    # cap at 64 MiB on the 128 MiB chips (v5e/v6e).
    return min(int(cap * 0.7), 64 * 1024 * 1024)


def _choose_tiles(b, c, hw, x_isz, m_isz, shared_mask, budget, sub):
    """Pick (tb, tc) batch/channel tiles for a (tb, tc, hw) block.

    Budget model per channel-row of `hw` elements: x + out tiles double
    buffered, per-channel mask (if any) double buffered, plus ~3 tile-sized
    f32 temporaries inside the kernel.
    """
    # TODO(synk): very large H*W (>~512*512) with the minimum channel tile can
    # still exceed the v7x VMEM budget; that would need an extra reduction
    # grid axis over the spatial dim with scratch accumulators.
    row_bytes = 4 * hw * x_isz + (0 if shared_mask else 2 * hw * m_isz) + 3 * hw * 4
    fixed_bytes = 2 * hw * m_isz if shared_mask else 0
    rows = max(1, (budget - fixed_bytes) // row_bytes)

    # Channel tile: full extent if it fits (always a legal block dim),
    # otherwise the largest sublane-packed multiple, preferring a divisor of
    # C so there is no ragged boundary block.
    if rows >= c or c <= sub:
        tc = c
    else:
        cap = min(max(sub, (rows // sub) * sub), max(sub, ((c - 1) // sub) * sub))
        tc = cap
        for cand in range(cap, max(cap // 2, sub) - 1, -sub):
            if c % cand == 0:
                tc = cand
                break

    # Batch tile: only when the whole channel extent fits in one block
    # (covers small-C layers without shrinking below the sublane packing).
    tb = 1
    if tc == c:
        tb = int(min(b, max(1, rows // max(c, 1))))
        for cand in range(tb, max(tb // 2, 1) - 1, -1):   # prefer divisor of B
            if b % cand == 0:
                tb = cand
                break

    # Megacore: guarantee >= 2 grid steps whenever possible so both
    # TensorCores of a v7x chip get work.
    def steps(tb_, tc_):
        return ((b + tb_ - 1) // tb_) * ((c + tc_ - 1) // tc_)

    if steps(tb, tc) < 2:
        if b >= 2:
            tb = (b + 1) // 2
        elif c > sub:
            half = (c + 1) // 2
            tc_half = ((half + sub - 1) // sub) * sub
            if tc_half < c:
                tc = tc_half
    return tb, tc


def mask_norm(x, mask):
    """MaskNorm forward. x: (B, C, H, W); mask: (B, 1, H, W) or (B, C, H, W)."""
    b, c, h, w = x.shape
    hw = h * w
    mc = mask.shape[1]
    assert mask.shape == (b, mc, h, w) and mc in (1, c)

    # Free reshapes (no HBM pass); the spatial dim stays UNPADDED -- the last
    # block dim equals the full array dim, so Mosaic masks the tail vreg.
    x3 = x.reshape(b, c, hw)
    m3 = mask.reshape(b, mc, hw)
    if not jnp.issubdtype(m3.dtype, jnp.floating):
        m3 = m3.astype(jnp.float32)

    x_isz = jnp.dtype(x.dtype).itemsize
    m_isz = jnp.dtype(m3.dtype).itemsize
    sub = 32 // x_isz                    # sublane packing: 8 for f32, 16 bf16
    shared_mask = (mc == 1)

    vmem_limit = _vmem_limit_bytes()
    budget = int(vmem_limit * 0.6)
    tb, tc = _choose_tiles(b, c, hw, x_isz, m_isz, shared_mask, budget, sub)
    grid = (pl.cdiv(b, tb), pl.cdiv(c, tc))

    x_spec = pl.BlockSpec((tb, tc, hw), lambda bi, ci: (bi, ci, 0))
    if shared_mask:
        m_spec = pl.BlockSpec((tb, 1, hw), lambda bi, ci: (bi, 0, 0))
    else:
        m_spec = pl.BlockSpec((tb, tc, hw), lambda bi, ci: (bi, ci, 0))

    out = pl.pallas_call(
        _make_masknorm_kernel(hw),
        out_shape=jax.ShapeDtypeStruct((b, c, hw), x.dtype),
        grid_spec=pltpu.PrefetchScalarGridSpec(
            num_scalar_prefetch=0,
            grid=grid,
            in_specs=[x_spec, m_spec],
            out_specs=pl.BlockSpec((tb, tc, hw), lambda bi, ci: (bi, ci, 0)),
        ),
        compiler_params=pltpu.CompilerParams(
            dimension_semantics=("parallel", "parallel"),
            vmem_limit_bytes=vmem_limit,
        ),
    )(x3, m3)

    return out.reshape(b, c, h, w)


def _mask_norm_ref(x, mask):
    """Pure-JAX reference mirroring the PyTorch module, for verification."""
    b, c, h, w = x.shape
    mask = jnp.broadcast_to(mask.astype(x.dtype), (b, c, h, w))

    def normalize_region(region, m):
        npix = jnp.sum(m, axis=(2, 3), keepdims=True)
        npix = jnp.where(npix == 0, 1.0, npix)
        mu = jnp.sum(region, axis=(2, 3), keepdims=True) / npix
        y = region + (1.0 - m) * mu
        mean_y = jnp.mean(y, axis=(2, 3), keepdims=True)
        var_y = jnp.mean((y - mean_y) ** 2, axis=(2, 3), keepdims=True)
        norm = (y - mean_y) / jnp.sqrt(var_y + _EPS)
        return norm * jnp.sqrt(npix / (h * w))

    fg = normalize_region(x * mask, mask)
    bg = normalize_region(x * (1.0 - mask), 1.0 - mask)
    return fg + bg


if __name__ == "__main__":
    key = jax.random.PRNGKey(0)
    k1, k2, k3, k4 = jax.random.split(key, 4)

    # Case 1: typical usage -- shared binary mask, H*W a multiple of 128.
    # Batch 0 gets an all-zero mask to exercise the num_pixels==0 guard.
    B, C, H, W = 2, 4, 16, 16
    x = jax.random.normal(k1, (B, C, H, W), dtype=jnp.float32)
    mask = (jax.random.uniform(k2, (B, 1, H, W)) > 0.5).astype(jnp.float32)
    mask = mask.at[0].set(0.0)
    out = mask_norm(x, mask)
    jax.block_until_ready(out)
    ref = _mask_norm_ref(x, mask)
    assert jnp.allclose(out, ref, atol=1e-4, rtol=1e-4), "case 1 mismatch"

    # Case 2: per-channel mask and H*W not a multiple of 128 (exercises the
    # unpadded tail-masked lane path -- no wrapper-side padding).
    B2, C2, H2, W2 = 2, 12, 5, 7
    x2 = jax.random.normal(k3, (B2, C2, H2, W2), dtype=jnp.float32)
    mask2 = (jax.random.uniform(k4, (B2, C2, H2, W2)) > 0.5).astype(jnp.float32)
    out2 = mask_norm(x2, mask2)
    jax.block_until_ready(out2)
    ref2 = _mask_norm_ref(x2, mask2)
    assert jnp.allclose(out2, ref2, atol=1e-4, rtol=1e-4), "case 2 mismatch"

    print("KERNEL_OK")
</pallas_src>

<mosaic_0001>
module attributes {stable_mosaic.version = 11 : i64} {
  func.func @kernel(%arg0: i32, %arg1: i32, %arg2: memref<1x4x256xf32, #tpu.memory_space<vmem>>, %arg3: memref<1x1x256xf32, #tpu.memory_space<vmem>>, %arg4: memref<1x4x256xf32, #tpu.memory_space<vmem>>) attributes {dimension_semantics = [#tpu.dimension_semantics<parallel>, #tpu.dimension_semantics<parallel>], iteration_bounds = array<i64: 2, 1>, scalar_prefetch = 0 : i64, scratch_operands = 0 : i64, tpu.core_type = #tpu.core_type<tc>, window_params = [{transform_indices = @transform_0, window_bounds = array<i64: 1, 4, 256>}, {transform_indices = @transform_1, window_bounds = array<i64: 1, 1, 256>}, {transform_indices = @transform_2, window_bounds = array<i64: 1, 4, 256>}]} {
    %c0 = arith.constant 0 : index
    %c0_0 = arith.constant 0 : index
    %c0_1 = arith.constant 0 : index
    %0 = vector.load %arg2[%c0, %c0_0, %c0_1] : memref<1x4x256xf32, #tpu.memory_space<vmem>>, vector<1x4x256xf32>
    %c0_2 = arith.constant 0 : index
    %c0_3 = arith.constant 0 : index
    %c0_4 = arith.constant 0 : index
    %1 = vector.load %arg3[%c0_2, %c0_3, %c0_4] : memref<1x1x256xf32, #tpu.memory_space<vmem>>, vector<1x1x256xf32>
    %2 = vector.broadcast %1 : vector<1x1x256xf32> to vector<1x4x256xf32>
    %3 = arith.mulf %0, %2 : vector<1x4x256xf32>
    %cst = arith.constant dense<0.000000e+00> : vector<1x1xf32>
    %4 = vector.multi_reduction <add>, %1, %cst [2] : vector<1x1x256xf32> to vector<1x1xf32>
    %5 = vector.shape_cast %4 : vector<1x1xf32> to vector<1x1x1xf32>
    %cst_5 = arith.constant dense<0.000000e+00> : vector<1x4xf32>
    %6 = vector.multi_reduction <add>, %0, %cst_5 [2] : vector<1x4x256xf32> to vector<1x4xf32>
    %7 = vector.shape_cast %6 : vector<1x4xf32> to vector<1x4x1xf32>
    %cst_6 = arith.constant dense<0.000000e+00> : vector<1x4xf32>
    %8 = vector.multi_reduction <add>, %3, %cst_6 [2] : vector<1x4x256xf32> to vector<1x4xf32>
    %9 = vector.shape_cast %8 : vector<1x4xf32> to vector<1x4x1xf32>
    %10 = arith.mulf %0, %0 : vector<1x4x256xf32>
    %cst_7 = arith.constant dense<0.000000e+00> : vector<1x4xf32>
    %11 = vector.multi_reduction <add>, %10, %cst_7 [2] : vector<1x4x256xf32> to vector<1x4xf32>
    %12 = vector.shape_cast %11 : vector<1x4xf32> to vector<1x4x1xf32>
    %13 = arith.mulf %3, %0 : vector<1x4x256xf32>
    %cst_8 = arith.constant dense<0.000000e+00> : vector<1x4xf32>
    %14 = vector.multi_reduction <add>, %13, %cst_8 [2] : vector<1x4x256xf32> to vector<1x4xf32>
    %15 = vector.shape_cast %14 : vector<1x4xf32> to vector<1x4x1xf32>
    %cst_9 = arith.constant 2.560000e+02 : f32
    %16 = vector.broadcast %cst_9 : f32 to vector<1x1x1xf32>
    %17 = arith.subf %16, %5 : vector<1x1x1xf32>
    %cst_10 = arith.constant 0.000000e+00 : f32
    %18 = vector.broadcast %cst_10 : f32 to vector<1x1x1xf32>
    %19 = arith.cmpf oeq, %5, %18 : vector<1x1x1xf32>
    %cst_11 = arith.constant 1.000000e+00 : f32
    %20 = vector.broadcast %cst_11 : f32 to vector<1x1x1xf32>
    %21 = arith.select %19, %20, %5 : vector<1x1x1xi1>, vector<1x1x1xf32>
    %cst_12 = arith.constant 0.000000e+00 : f32
    %22 = vector.broadcast %cst_12 : f32 to vector<1x1x1xf32>
    %23 = arith.cmpf oeq, %17, %22 : vector<1x1x1xf32>
    %cst_13 = arith.constant 1.000000e+00 : f32
    %24 = vector.broadcast %cst_13 : f32 to vector<1x1x1xf32>
    %25 = arith.select %23, %24, %17 : vector<1x1x1xi1>, vector<1x1x1xf32>
    %26 = arith.subf %7, %9 : vector<1x4x1xf32>
    %27 = arith.subf %12, %15 : vector<1x4x1xf32>
    %28 = vector.broadcast %21 : vector<1x1x1xf32> to vector<1x4x1xf32>
    %29 = arith.divf %9, %28 : vector<1x4x1xf32>
    %30 = vector.broadcast %25 : vector<1x1x1xf32> to vector<1x4x1xf32>
    %31 = arith.divf %26, %30 : vector<1x4x1xf32>
    %cst_14 = arith.constant 2.000000e+00 : f32
    %32 = vector.broadcast %cst_14 : f32 to vector<1x4x1xf32>
    %33 = arith.mulf %32, %29 : vector<1x4x1xf32>
    %34 = arith.mulf %33, %9 : vector<1x4x1xf32>
    %35 = arith.subf %15, %34 : vector<1x4x1xf32>
    %36 = vector.broadcast %5 : vector<1x1x1xf32> to vector<1x4x1xf32>
    %37 = arith.mulf %36, %29 : vector<1x4x1xf32>
    %38 = arith.mulf %37, %29 : vector<1x4x1xf32>
    %39 = arith.addf %35, %38 : vector<1x4x1xf32>
    %cst_15 = arith.constant 3.906250e-03 : f32
    %40 = vector.broadcast %cst_15 : f32 to vector<1x4x1xf32>
    %41 = arith.mulf %39, %40 : vector<1x4x1xf32>
    %cst_16 = arith.constant 2.000000e+00 : f32
    %42 = vector.broadcast %cst_16 : f32 to vector<1x4x1xf32>
    %43 = arith.mulf %42, %31 : vector<1x4x1xf32>
    %44 = arith.mulf %43, %26 : vector<1x4x1xf32>
    %45 = arith.subf %27, %44 : vector<1x4x1xf32>
    %46 = vector.broadcast %17 : vector<1x1x1xf32> to vector<1x4x1xf32>
    %47 = arith.mulf %46, %31 : vector<1x4x1xf32>
    %48 = arith.mulf %47, %31 : vector<1x4x1xf32>
    %49 = arith.addf %45, %48 : vector<1x4x1xf32>
    %cst_17 = arith.constant 3.906250e-03 : f32
    %50 = vector.broadcast %cst_17 : f32 to vector<1x4x1xf32>
    %51 = arith.mulf %49, %50 : vector<1x4x1xf32>
    %cst_18 = arith.constant 0.000000e+00 : f32
    %52 = vector.broadcast %cst_18 : f32 to vector<1x4x1xf32>
    %53 = arith.maximumf %41, %52 : vector<1x4x1xf32>
    %cst_19 = arith.constant 0.000000e+00 : f32
    %54 = vector.broadcast %cst_19 : f32 to vector<1x4x1xf32>
    %55 = arith.maximumf %51, %54 : vector<1x4x1xf32>
    %cst_20 = arith.constant 9.99999974E-6 : f32
    %56 = vector.broadcast %cst_20 : f32 to vector<1x4x1xf32>
    %57 = arith.addf %53, %56 : vector<1x4x1xf32>
    %58 = math.rsqrt %57 : vector<1x4x1xf32>
    %cst_21 = arith.constant 3.906250e-03 : f32
    %59 = vector.broadcast %cst_21 : f32 to vector<1x1x1xf32>
    %60 = arith.mulf %21, %59 : vector<1x1x1xf32>
    %61 = math.sqrt %60 : vector<1x1x1xf32>
    %62 = vector.broadcast %61 : vector<1x1x1xf32> to vector<1x4x1xf32>
    %63 = arith.mulf %58, %62 : vector<1x4x1xf32>
    %cst_22 = arith.constant 9.99999974E-6 : f32
    %64 = vector.broadcast %cst_22 : f32 to vector<1x4x1xf32>
    %65 = arith.addf %55, %64 : vector<1x4x1xf32>
    %66 = math.rsqrt %65 : vector<1x4x1xf32>
    %cst_23 = arith.constant 3.906250e-03 : f32
    %67 = vector.broadcast %cst_23 : f32 to vector<1x1x1xf32>
    %68 = arith.mulf %25, %67 : vector<1x1x1xf32>
    %69 = math.sqrt %68 : vector<1x1x1xf32>
    %70 = vector.broadcast %69 : vector<1x1x1xf32> to vector<1x4x1xf32>
    %71 = arith.mulf %66, %70 : vector<1x4x1xf32>
    %72 = vector.broadcast %29 : vector<1x4x1xf32> to vector<1x4x256xf32>
    %73 = arith.subf %0, %72 : vector<1x4x256xf32>
    %74 = vector.broadcast %63 : vector<1x4x1xf32> to vector<1x4x256xf32>
    %75 = arith.mulf %73, %74 : vector<1x4x256xf32>
    %76 = vector.broadcast %1 : vector<1x1x256xf32> to vector<1x4x256xf32>
    %77 = arith.mulf %76, %75 : vector<1x4x256xf32>
    %cst_24 = arith.constant 1.000000e+00 : f32
    %78 = vector.broadcast %cst_24 : f32 to vector<1x1x256xf32>
    %79 = arith.subf %78, %1 : vector<1x1x256xf32>
    %80 = vector.broadcast %31 : vector<1x4x1xf32> to vector<1x4x256xf32>
    %81 = arith.subf %0, %80 : vector<1x4x256xf32>
    %82 = vector.broadcast %71 : vector<1x4x1xf32> to vector<1x4x256xf32>
    %83 = arith.mulf %81, %82 : vector<1x4x256xf32>
    %84 = vector.broadcast %79 : vector<1x1x256xf32> to vector<1x4x256xf32>
    %85 = arith.mulf %84, %83 : vector<1x4x256xf32>
    %86 = arith.addf %77, %85 : vector<1x4x256xf32>
    %c0_25 = arith.constant 0 : index
    %c0_26 = arith.constant 0 : index
    %c0_27 = arith.constant 0 : index
    %87 = vector.load %arg4[%c0_25, %c0_26, %c0_27] : memref<1x4x256xf32, #tpu.memory_space<vmem>>, vector<1x4x256xf32>
    tpu.vector_store %arg4[%c0_25, %c0_26, %c0_27], %86 {strides = array<i32>} : memref<1x4x256xf32, #tpu.memory_space<vmem>>, vector<1x4x256xf32>,
    return
  }
  func.func @transform_0(%arg0: i32, %arg1: i32) -> (i32, i32, i32) {
    %c0_i32 = arith.constant 0 : i32
    %c0_i32_0 = arith.constant 0 : i32
    return %arg0, %arg1, %c0_i32 : i32, i32, i32
  }
  func.func @transform_1(%arg0: i32, %arg1: i32) -> (i32, i32, i32) {
    %c0_i32 = arith.constant 0 : i32
    %c0_i32_0 = arith.constant 0 : i32
    %c0_i32_1 = arith.constant 0 : i32
    return %arg0, %c0_i32, %c0_i32_0 : i32, i32, i32
  }
  func.func @transform_2(%arg0: i32, %arg1: i32) -> (i32, i32, i32) {
    %c0_i32 = arith.constant 0 : i32
    %c0_i32_0 = arith.constant 0 : i32
    return %arg0, %arg1, %c0_i32 : i32, i32, i32
  }
}

</mosaic_0001>

<llo_original>
// kernel: tpu_custom_call.1
$region0: #{tpu_custom_call.1}
  #allocation0 [shape = 'u32[]', space=smem, size = 0x4, offset = 0x4, fixed_abs, tag = 'smem constant byte address 0x4 - core index']
  #allocation1 [shape = 'u32[72,128]{1,0:T(1,128)}', space=vmem, size = 0x9000, scoped, tag = 'internal scratch']
  %s0 = inlined_call_operand.hbm [shape: f32[2,4,256], index: 0, kind: input, shape index: {}]
  %s1 = inlined_call_operand.hbm [shape: f32[2,1,256], index: 1, kind: input, shape index: {}]
  %s2 = inlined_call_operand.hbm [shape: f32[2,4,256], index: 2, kind: output, shape index: {}]
  %s3 = sld [smem:[#allocation0]]
  $region49: #{tpu_custom_call.1} parent=0
    _
  %s5 = ssub.s32 1, %s3
  %s6 = scalar_select 0, %s5, %s3
  $region1: #{tpu_custom_call.1} parent=0
    #allocation2 [shape = 'u8[8192]{0}', space=vmem, size = 0x2000, scoped, tag = 'input window, operand 0']
    #allocation3 [shape = 's32[2]{0}', space=sflag, size = 0x8, scoped, tag = 'scoped memory for tpu_custom_call.1']
    #allocation4 [shape = 's32[2]{0}', space=sflag, size = 0x8, scoped, tag = 'scoped memory for tpu_custom_call.1']
    #allocation5 [shape = 'u8[2048]{0}', space=vmem, size = 0x800, scoped, tag = 'input window, operand 1']
    #allocation6 [shape = 's32[2]{0}', space=sflag, size = 0x8, scoped, tag = 'scoped memory for tpu_custom_call.1']
    #allocation7 [shape = 'u8[8192]{0}', space=vmem, size = 0x2000, scoped, tag = 'output window, operand 0']
    %7 = vsyncpa [#allocation3], 0
    %s8 = scalar_lea.sflag [#allocation3], 1
    %9 = vsyncpa %s8, 0
    %10 = vsyncpa [#allocation6], 0
    %s11 = scalar_lea.sflag [#allocation6], 1
    %12 = vsyncpa %s11, 0
    %13 = vsyncpa [#allocation4], 0
    %s14 = scalar_lea.sflag [#allocation4], 1
    %15 = vsyncpa %s14, 0
    loop: start=0, step=1, limit=4
    $region2: #{tpu_custom_call.1} parent=1 // loop_pre_header
      _
    $region3: #{tpu_custom_call.1} parent=1 // loop_header
      %s17 = sphi 0, %s21
      %p18 = scmp.ge.s32.totalorder %s17, 4
      %s24 = sphi 0, %s36
      %s25 = sphi 0, %s32
      %s26 = sphi 0, %s24
      %s27 = sphi 0, %s25
      %s28 = sphi 0, %s26
      %s29 = sphi 0, %s27
      %s41 = sphi 0, %s43
      %s44 = sphi 0, %s41
      %s45 = sphi 0, %s44
      %s61 = sphi 0, %s45
      %s67 = sphi 0, %s69
      %s70 = sphi 0, %s67
      %s71 = sphi 0, %s70
      %s87 = sphi 0, %s71
      %s95 = sphi 0, %s97
      %s98 = sphi 0, %s95
      %s99 = sphi 0, %s98
      %s115 = sphi 0, %s99
    $region4: #{tpu_custom_call.1} parent=1 // loop_header_branch
      %20 = sbr.rel (%p18) target = $region8
    $region5: #{tpu_custom_call.1} parent=1 // loop_body
      %s22 = ssub.s32 %s17, 1
      %s23 = ssub.s32 %s17, 2
      %s30 = sadd.s32 1, %s25
      %p31 = scmp.ge.s32.totalorder %s30, 1
      %s32 = scalar_select %p31, 0, %s30
      %s33 = sadd.s32 1, %s24
      %s34 = scalar_select %p31, %s33, %s24
      %p35 = scmp.ge.s32.totalorder %s34, 2
      %s36 = scalar_select %p35, 0, %s34
      %s37 = ssub.s32 %s24, %s36
      %s38 = ssub.s32 %s25, %s32
      %s39 = sor.u32 %s37, %s38
      %p40 = scmp.eq.s32.totalorder %s39, 0
      %s42 = sadd.s32 %s41, 1
      %s43 = scalar_select %p40, %s41, %s42
      %p46 = pneg %p40
      %p47 = scmp.eq.s32.totalorder %s17, 1
      %p48 = por %p46, %p47
      %p49 = scmp.ne.s32.totalorder %s41, %s44
      %p50 = scmp.eq.s32.totalorder %s17, 0
      %p51 = por %p49, %p50
      %p52 = scmp.ne.s32.totalorder %s41, %s44
      %p53 = scmp.eq.s32.totalorder %s22, 1
      %p54 = por %p52, %p53
      %p55 = scmp.ne.s32.totalorder %s44, %s45
      %p56 = scmp.eq.s32.totalorder %s22, 0
      %p57 = por %p55, %p56
      %p58 = scmp.ne.s32.totalorder %s44, %s45
      %p59 = scmp.eq.s32.totalorder %s23, 1
      %p60 = por %p58, %p59
      %p62 = scmp.ne.s32.totalorder %s45, %s61
      %p63 = scmp.eq.s32.totalorder %s23, 0
      %p64 = por %p62, %p63
      %s65 = ssub.s32 %s24, %s36
      %p66 = scmp.eq.s32.totalorder %s65, 0
      %s68 = sadd.s32 %s67, 1
      %s69 = scalar_select %p66, %s67, %s68
      %p72 = pneg %p66
      %p73 = scmp.eq.s32.totalorder %s17, 1
      %p74 = por %p72, %p73
      %p75 = scmp.ne.s32.totalorder %s67, %s70
      %p76 = scmp.eq.s32.totalorder %s17, 0
      %p77 = por %p75, %p76
      %p78 = scmp.ne.s32.totalorder %s67, %s70
      %p79 = scmp.eq.s32.totalorder %s22, 1
      %p80 = por %p78, %p79
      %p81 = scmp.ne.s32.totalorder %s70, %s71
      %p82 = scmp.eq.s32.totalorder %s22, 0
      %p83 = por %p81, %p82
      %p84 = scmp.ne.s32.totalorder %s70, %s71
      %p85 = scmp.eq.s32.totalorder %s23, 1
      %p86 = por %p84, %p85
      %p88 = scmp.ne.s32.totalorder %s71, %s87
      %p89 = scmp.eq.s32.totalorder %s23, 0
      %p90 = por %p88, %p89
      %s91 = ssub.s32 %s24, %s36
      %s92 = ssub.s32 %s25, %s32
      %s93 = sor.u32 %s91, %s92
      %p94 = scmp.eq.s32.totalorder %s93, 0
      %s96 = sadd.s32 %s95, 1
      %s97 = scalar_select %p94, %s95, %s96
      %p100 = pneg %p94
      %p101 = scmp.eq.s32.totalorder %s17, 1
      %p102 = por %p100, %p101
      %p103 = scmp.ne.s32.totalorder %s95, %s98
      %p104 = scmp.eq.s32.totalorder %s17, 0
      %p105 = por %p103, %p104
      %p106 = scmp.ne.s32.totalorder %s95, %s98
      %p107 = scmp.eq.s32.totalorder %s22, 1
      %p108 = por %p106, %p107
      %p109 = scmp.ne.s32.totalorder %s98, %s99
      %p110 = scmp.eq.s32.totalorder %s22, 0
      %p111 = por %p109, %p110
      %p112 = scmp.ne.s32.totalorder %s98, %s99
      %p113 = scmp.eq.s32.totalorder %s23, 1
      %p114 = por %p112, %p113
      %p116 = scmp.ne.s32.totalorder %s99, %s115
      %p117 = scmp.eq.s32.totalorder %s23, 0
      %p118 = por %p116, %p117
      %p119 = scmp.le.s32.totalorder 1, %s17
      %p120 = scmp.lt.s32.totalorder %s17, 3
      %p121 = pnand %p119, %p120
      %p122 = pneg %p121
      // Predicated region
      $region9: #{tpu_custom_call.1} parent=5 // pred_check
        _
      $region10: #{tpu_custom_call.1} parent=5 // pred_check_branch
        %124 = sbr.rel (%p121) target = $region12
      $region11: #{tpu_custom_call.1} parent=5 // pred_region
        %s125 = ssub.s32 %s17, 1
      $region12: #{tpu_custom_call.1} parent=5 // pred_fallthru
        _
      %p126 = scmp.lt.s32.totalorder %s17, 2
      // Predicated region
      $region13: #{tpu_custom_call.1} parent=5 // pred_check
        %p127 = pneg %p126
      $region14: #{tpu_custom_call.1} parent=5 // pred_check_branch
        %129 = sbr.rel (%p127) target = $region16
      $region15: #{tpu_custom_call.1} parent=5 // pred_region
        // Predicated region
        $region17: #{tpu_custom_call.1} parent=15 // pred_check
          %p130 = pneg %p51
        $region18: #{tpu_custom_call.1} parent=15 // pred_check_branch
          %132 = sbr.rel (%p130) target = $region20
        $region19: #{tpu_custom_call.1} parent=15 // pred_region
          %s133 = sand.u32 %s41, 1
          %s134 = scalar_lea.sflag [#allocation3], %s133
          %s135 = sand.u32 %s41, 1
          %s136 = smul.addr %s135, 8
          %s137 = scalar_lea.vmem [#allocation2], %s136
          %139 = vsyncadd %s134, 0
          %s140 = smul.addr %s25, 2
          %s141 = smul.addr %s24, 2
          %s142 = sadd.s32 %s140, %s141
          %s143 = smul.addr %s142, 4
          %s144 = scalar_lea.hbm %s0, %s143
          %s146 = sshll.u32 %s144, 4
          %s147 = int_to_ptr.hbm [resolvable:$true] %s146
          %s148 = sshll.u32 %s137, 4
          %s149 = int_to_ptr.vmem [resolvable:$true] %s148
          %151 = dma.hbm_to_vmem [thread:$0]  %s147, 128, %s149, %s134
        $region20: #{tpu_custom_call.1} parent=15 // pred_fallthru
          _
        // Predicated region
        $region21: #{tpu_custom_call.1} parent=15 // pred_check
          %p152 = pneg %p77
        $region22: #{tpu_custom_call.1} parent=15 // pred_check_branch
          %154 = sbr.rel (%p152) target = $region24
        $region23: #{tpu_custom_call.1} parent=15 // pred_region
          %s155 = sand.u32 %s67, 1
          %s156 = scalar_lea.sflag [#allocation6], %s155
          %s157 = sand.u32 %s67, 1
          %s158 = smul.addr %s157, 2
          %s159 = scalar_lea.vmem [#allocation5], %s158
          %161 = vsyncadd %s156, 0
          %s162 = smul.addr %s24, 2
          %s163 = scalar_lea.hbm %s1, %s162
          %s165 = sshll.u32 %s163, 4
          %s166 = int_to_ptr.hbm [resolvable:$true] %s165
          %s167 = sshll.u32 %s159, 4
          %s168 = int_to_ptr.vmem [resolvable:$true] %s167
          %170 = dma.hbm_to_vmem [thread:$0]  %s166, 32, %s168, %s156
        $region24: #{tpu_custom_call.1} parent=15 // pred_fallthru
          _
      $region16: #{tpu_custom_call.1} parent=5 // pred_fallthru
        _
      %p171 = scmp.le.s32.totalorder 1, %s17
      %p172 = scmp.lt.s32.totalorder %s17, 3
      %p173 = pnand %p171, %p172
      %p174 = pneg %p173
      // Predicated region
      $region25: #{tpu_custom_call.1} parent=5 // pred_check
        _
      $region26: #{tpu_custom_call.1} parent=5 // pred_check_branch
        %176 = sbr.rel (%p173) target = $region28
      $region27: #{tpu_custom_call.1} parent=5 // pred_region
        %s177 = ssub.s32 %s17, 1
        %s178 = sand.u32 %s44, 1
        %s179 = scalar_lea.sflag [#allocation3], %s178
        %s180 = sand.u32 %s44, 1
        %s181 = smul.addr %s180, 8
        %s182 = scalar_lea.vmem [#allocation2], %s181
        // Predicated region
        $region29: #{tpu_custom_call.1} parent=27 // pred_check
          %p183 = pneg %p57
        $region30: #{tpu_custom_call.1} parent=27 // pred_check_branch
          %185 = sbr.rel (%p183) target = $region32
        $region31: #{tpu_custom_call.1} parent=27 // pred_region
          %187 = dma.done %s179, 128
        $region32: #{tpu_custom_call.1} parent=27 // pred_fallthru
          _
        %s188 = sand.u32 %s70, 1
        %s189 = scalar_lea.sflag [#allocation6], %s188
        %s190 = sand.u32 %s70, 1
        %s191 = smul.addr %s190, 2
        %s192 = scalar_lea.vmem [#allocation5], %s191
        // Predicated region
        $region33: #{tpu_custom_call.1} parent=27 // pred_check
          %p193 = pneg %p83
        $region34: #{tpu_custom_call.1} parent=27 // pred_check_branch
          %195 = sbr.rel (%p193) target = $region36
        $region35: #{tpu_custom_call.1} parent=27 // pred_region
          %197 = dma.done %s189, 32
        $region36: #{tpu_custom_call.1} parent=27 // pred_fallthru
          _
        %s198 = sand.u32 %s44, 1
        %s199 = scalar_lea.sflag [#allocation3], %s198
        %s200 = sand.u32 %s44, 1
        %s201 = smul.addr %s200, 8
        %s202 = scalar_lea.vmem [#allocation2], %s201
        %p203 = pneg %p57
        %p204 = pneg %p54
        %s205 = sand.u32 %s70, 1
        %s206 = scalar_lea.sflag [#allocation6], %s205
        %s207 = sand.u32 %s70, 1
        %s208 = smul.addr %s207, 2
        %s209 = scalar_lea.vmem [#allocation5], %s208
        %p210 = pneg %p83
        %p211 = pneg %p80
        %p212 = pneg %p111
        %p213 = pneg %p108
        %s214 = sand.u32 %s98, 1
        %s215 = scalar_lea.sflag [#allocation4], %s214
        %s216 = sand.u32 %s98, 1
        %s217 = smul.addr %s216, 8
        %s218 = scalar_lea.vmem [#allocation7], %s217
        %v219 = vld [vmem:[%s182] sm:$0xff]
        %v220 = vld [vmem:[%s192] sm:$0x3]
        %v222 = vperm.slane %v220, 0
        %v223 = vperm.slane %v220, 1
        %v226 = vrot.slane %v223, 4
        %vm227 = vcmask 1043456
        %v228 = vsel %vm227, %v222, %v226
        %v230 = vmul.f32 %v219, %v228
        %vm231 = vcmask 1040384
        %v232 = vsel %vm231, %v222, 0.0
        %v233 = vsel %vm231, %v223, 0.0
        %v234 = vadd.f32 %v232, %v233
        %235 = vadd.xlane.f32.xlu0 %v234
        %v236 = vpop.xlane.xlu0 %235
        %238 = vst [vmem:[#allocation1] ss:$2 sm:$0xff] %v219
        %v239 = vld.sshfl [vmem:[#allocation1] sm:$0xff pattern:$0x75316420]
        %v240 = vld.sshfl [vmem:[#allocation1 + $0x8] sm:$0xff pattern:$0x75316420]
        %v243 = vsel %vm227, %v239, 0.0
        %v244 = vsel %vm227, %v240, 0.0
        %v245 = vadd.f32 %v243, %v244
        %246 = vadd.xlane.f32.xlu0 %v245
        %v247 = vpop.xlane.xlu0 %246
        %249 = vst [vmem:[#allocation1] ss:$2 sm:$0xff] %v230
        %v250 = vld.sshfl [vmem:[#allocation1] sm:$0xff pattern:$0x75316420]
        %v251 = vld.sshfl [vmem:[#allocation1 + $0x8] sm:$0xff pattern:$0x75316420]
        %v254 = vsel %vm227, %v250, 0.0
        %v255 = vsel %vm227, %v251, 0.0
        %v256 = vadd.f32 %v254, %v255
        %257 = vadd.xlane.f32.xlu0 %v256
        %v258 = vpop.xlane.xlu0 %257
        %v259 = vmul.f32 %v219, %v219
        %261 = vst [vmem:[#allocation1] ss:$2 sm:$0xff] %v259
        %v262 = vld.sshfl [vmem:[#allocation1] sm:$0xff pattern:$0x75316420]
        %v263 = vld.sshfl [vmem:[#allocation1 + $0x8] sm:$0xff pattern:$0x75316420]
        %v266 = vsel %vm227, %v262, 0.0
        %v267 = vsel %vm227, %v263, 0.0
        %v268 = vadd.f32 %v266, %v267
        %269 = vadd.xlane.f32.xlu0 %v268
        %v270 = vpop.xlane.xlu0 %269
        %v271 = vmul.f32 %v230, %v219
        %273 = vst [vmem:[#allocation1] ss:$2 sm:$0xff] %v271
        %v274 = vld.sshfl [vmem:[#allocation1] sm:$0xff pattern:$0x75316420]
        %v275 = vld.sshfl [vmem:[#allocation1 + $0x8] sm:$0xff pattern:$0x75316420]
        %v278 = vsel %vm227, %v274, 0.0
        %v279 = vsel %vm227, %v275, 0.0
        %v280 = vadd.f32 %v278, %v279
        %281 = vadd.xlane.f32.xlu0 %v280
        %v282 = vpop.xlane.xlu0 %281
        %v283 = vsub.f32 256.0, %v236
        %vm284 = vcmp.eq.f32.partialorder %v236, 0.0
        %v285 = vsel %vm284, 1.0, %v236
        %vm286 = vcmp.eq.f32.partialorder %v283, 0.0
        %v287 = vsel %vm286, 1.0, %v283
        %v288 = vsub.f32 %v247, %v258
        %v289 = vsub.f32 %v270, %v282
        %v290 = vperm.slane %v285, 0
        %v291 = vrcp.pop %v290
        %v292 = vmul.f32 %v290, %v291
        %v293 = vsub.f32 1.0, %v292
        %v294 = vmul.f32 %v291, %v293
        %v295 = vadd.f32 %v291, %v294
        %vm296 = vweird.f32 %v290
        %vm297 = vweird.f32 %v291
        %vm298 = vmor %vm296, %vm297
        %v299 = vsel %vm298, %v291, %v295
        %v300 = vand.u32 2147483647, %v290
        %vm301 = vcmp.eq.f32.partialorder %v300, 8.507059e+37
        %v302 = vand.u32 %v290, 2147483648
        %v303 = vor.u32 1.1754944e-38, %v302
        %v304 = vsel %vm301, %v303, %v299
        %v305 = vmul.f32 %v258, %v304
        %v306 = vperm.slane %v287, 0
        %v307 = vrcp.pop %v306
        %v308 = vmul.f32 %v306, %v307
        %v309 = vsub.f32 1.0, %v308
        %v310 = vmul.f32 %v307, %v309
        %v311 = vadd.f32 %v307, %v310
        %vm312 = vweird.f32 %v306
        %vm313 = vweird.f32 %v307
        %vm314 = vmor %vm312, %vm313
        %v315 = vsel %vm314, %v307, %v311
        %v316 = vand.u32 2147483647, %v306
        %vm317 = vcmp.eq.f32.partialorder %v316, 8.507059e+37
        %v318 = vand.u32 %v306, 2147483648
        %v319 = vor.u32 1.1754944e-38, %v318
        %v320 = vsel %vm317, %v319, %v315
        %v321 = vmul.f32 %v288, %v320
        %v322 = vmul.f32 %v305, 2.0
        %v323 = vmul.f32 %v322, %v258
        %v324 = vsub.f32 %v282, %v323
        %v325 = vperm.slane %v236, 0
        %v326 = vmul.f32 %v325, %v305
        %v327 = vmul.f32 %v326, %v305
        %v328 = vadd.f32 %v324, %v327
        %v329 = vmul.f32 %v328, 0.00390625
        %v330 = vmul.f32 %v321, 2.0
        %v331 = vmul.f32 %v330, %v288
        %v332 = vsub.f32 %v289, %v331
        %v333 = vperm.slane %v283, 0
        %v334 = vmul.f32 %v333, %v321
        %v335 = vmul.f32 %v334, %v321
        %v336 = vadd.f32 %v332, %v335
        %v337 = vmul.f32 %v336, 0.00390625
        %v338 = vmax.f32 %v329, 0.0
        %v339 = vmax.f32 %v337, 0.0
        %v340 = vadd.f32 %v338, 1e-05
        %v341 = vrsqrt.pop %v340
        %v342 = vmul.f32 %v341, %v340
        %v343 = vmul.f32 %v342, %v341
        %v344 = vmul.f32 0.5, %v343
        %v345 = vsub.f32 1.5, %v344
        %v346 = vmul.f32 %v341, %v345
        %vm347 = vweird.f32 %v340
        %vm348 = vweird.f32 %v341
        %vm349 = vmor %vm347, %vm348
        %v350 = vsel %vm349, %v341, %v346
        %v351 = vmul.f32 %v285, 0.00390625
        %v352 = vrsqrt.pop %v351
        %v353 = vmul.f32 %v352, %v351
        %v354 = vmul.f32 %v353, %v352
        %v355 = vmul.f32 0.5, %v354
        %v356 = vsub.f32 1.5, %v355
        %v357 = vmul.f32 %v352, %v356
        %v358 = vmul.f32 %v351, %v357
        %vm359 = vcmp.eq.f32.partialorder %v351, inf
        %v360 = vsel %vm359, %v351, %v358
        %vm361 = vcmp.eq.f32.partialorder %v351, 0.0
        %v362 = vand.u32 %v351, 2147483648
        %v363 = vsel %vm361, %v362, %v360
        %v364 = vperm.slane %v363, 0
        %v365 = vmul.f32 %v350, %v364
        %v366 = vadd.f32 %v339, 1e-05
        %v367 = vrsqrt.pop %v366
        %v368 = vmul.f32 %v367, %v366
        %v369 = vmul.f32 %v368, %v367
        %v370 = vmul.f32 0.5, %v369
        %v371 = vsub.f32 1.5, %v370
        %v372 = vmul.f32 %v367, %v371
        %vm373 = vweird.f32 %v366
        %vm374 = vweird.f32 %v367
        %vm375 = vmor %vm373, %vm374
        %v376 = vsel %vm375, %v367, %v372
        %v377 = vmul.f32 %v287, 0.00390625
        %v378 = vrsqrt.pop %v377
        %v379 = vmul.f32 %v378, %v377
        %v380 = vmul.f32 %v379, %v378
        %v381 = vmul.f32 0.5, %v380
        %v382 = vsub.f32 1.5, %v381
        %v383 = vmul.f32 %v378, %v382
        %v384 = vmul.f32 %v377, %v383
        %vm385 = vcmp.eq.f32.partialorder %v377, inf
        %v386 = vsel %vm385, %v377, %v384
        %vm387 = vcmp.eq.f32.partialorder %v377, 0.0
        %v388 = vand.u32 %v377, 2147483648
        %v389 = vsel %vm387, %v388, %v386
        %v390 = vperm.slane %v389, 0
        %v391 = vmul.f32 %v376, %v390
        %v394 = vunpack.c.l.s4 839922192
        %v395 = vunpack.c.0.s8 %v394
        %v396 = vperm.slane %v305, %v395
        %v398 = vsub.f32 %v219, %v396
        %v401 = vunpack.c.l.s4 839922192
        %v402 = vunpack.c.0.s8 %v401
        %v403 = vperm.slane %v365, %v402
        %v405 = vmul.f32 %v398, %v403
        %407 = vst [vmem:[#allocation1] ss:$2 sm:$0xff] %v405
        %v408 = vld.sshfl [vmem:[#allocation1] sm:$0xff pattern:$0x75316420]
        %v409 = vld.sshfl [vmem:[#allocation1 + $0x8] sm:$0xff pattern:$0x75316420]
        %v412 = vmul.f32 %v222, %v408
        %v413 = vmul.f32 %v223, %v409
        %v414 = vsub.f32 1.0, %v220
        %v417 = vunpack.c.l.s4 839922192
        %v418 = vunpack.c.0.s8 %v417
        %v419 = vperm.slane %v321, %v418
        %v421 = vsub.f32 %v219, %v419
        %v424 = vunpack.c.l.s4 839922192
        %v425 = vunpack.c.0.s8 %v424
        %v426 = vperm.slane %v391, %v425
        %v428 = vmul.f32 %v421, %v426
        %v430 = vperm.slane %v414, 0
        %v431 = vperm.slane %v414, 1
        %435 = vst [vmem:[#allocation1] ss:$2 sm:$0xff] %v428
        %v436 = vld.sshfl [vmem:[#allocation1] sm:$0xff pattern:$0x75316420]
        %v437 = vld.sshfl [vmem:[#allocation1 + $0x8] sm:$0xff pattern:$0x75316420]
        %v440 = vmul.f32 %v430, %v436
        %v441 = vmul.f32 %v431, %v437
        %v442 = vadd.f32 %v412, %v440
        %v443 = vadd.f32 %v413, %v441
        %v446 = vrot.slane %v443, 4
        %v447 = vsel %vm227, %v442, %v446
        %449 = vst [vmem:[%s218] sm:$0xff] %v447
        %s450 = sand.u32 %s98, 1
        %s451 = scalar_lea.sflag [#allocation4], %s450
        %s452 = sand.u32 %s98, 1
        %s453 = smul.addr %s452, 8
        %s454 = scalar_lea.vmem [#allocation7], %s453
        // Predicated region
        $region37: #{tpu_custom_call.1} parent=27 // pred_check
          %p455 = pneg %p108
        $region38: #{tpu_custom_call.1} parent=27 // pred_check_branch
          %457 = sbr.rel (%p455) target = $region40
        $region39: #{tpu_custom_call.1} parent=27 // pred_region
          %459 = vsyncadd %s451, 0
          %s460 = smul.addr %s27, 2
          %s461 = smul.addr %s26, 2
          %s462 = sadd.s32 %s460, %s461
          %s463 = smul.addr %s462, 4
          %s464 = scalar_lea.hbm %s2, %s463
          %s466 = sshll.u32 %s454, 4
          %s467 = int_to_ptr.vmem [resolvable:$true] %s466
          %s468 = sshll.u32 %s464, 4
          %s469 = int_to_ptr.hbm [resolvable:$true] %s468
          %471 = dma.vmem_to_hbm [thread:$0]  %s467, 128, %s469, %s451
        $region40: #{tpu_custom_call.1} parent=27 // pred_fallthru
          _
      $region28: #{tpu_custom_call.1} parent=5 // pred_fallthru
        _
      %p472 = scmp.le.s32.totalorder 2, %s17
      // Predicated region
      $region41: #{tpu_custom_call.1} parent=5 // pred_check
        %p473 = pneg %p472
      $region42: #{tpu_custom_call.1} parent=5 // pred_check_branch
        %475 = sbr.rel (%p473) target = $region44
      $region43: #{tpu_custom_call.1} parent=5 // pred_region
        %s476 = ssub.s32 %s17, 2
        // Predicated region
        $region45: #{tpu_custom_call.1} parent=43 // pred_check
          %p477 = pneg %p114
        $region46: #{tpu_custom_call.1} parent=43 // pred_check_branch
          %479 = sbr.rel (%p477) target = $region48
        $region47: #{tpu_custom_call.1} parent=43 // pred_region
          %s480 = sand.u32 %s99, 1
          %s481 = scalar_lea.sflag [#allocation4], %s480
          %s482 = sand.u32 %s99, 1
          %s483 = smul.addr %s482, 8
          %s484 = scalar_lea.vmem [#allocation7], %s483
          %486 = dma.done %s481, 128
        $region48: #{tpu_custom_call.1} parent=43 // pred_fallthru
          _
      $region44: #{tpu_custom_call.1} parent=5 // pred_fallthru
        _
    $region6: #{tpu_custom_call.1} parent=1 // loop_footer
      %s21 = sadd.s32 1, %s17
    $region7: #{tpu_custom_call.1} parent=1 // loop_footer_branch
      %16 = sbr.rel target = $region3
    $region8: #{tpu_custom_call.1} parent=1 // loop_exit
      _
    %487 = vsyncpa [#allocation3], 1
    %s488 = scalar_lea.sflag [#allocation3], 1
    %489 = vsyncpa %s488, 1
    %490 = vsyncpa [#allocation6], 1
    %s491 = scalar_lea.sflag [#allocation6], 1
    %492 = vsyncpa %s491, 1
    %493 = vsyncpa [#allocation4], 1
    %s494 = scalar_lea.sflag [#allocation4], 1
    %495 = vsyncpa %s494, 1

</llo_original>
